<compile_context>
chip_gen: v5e
topology: v5e:2x2
jax: 0.10.0
libtpu: 0.0.40
codegen_flags: <defaults>
</compile_context>

<pallas_src>
from functools import partial

import jax
import jax.numpy as jnp
from jax import lax
from jax.experimental import pallas as pl
from jax.experimental.pallas import tpu as pltpu


def basic_block_kernel(x_ref, w_ref, pp_ref, o_ref, *, k, H, W, pad):
    """One image per grid step.

    x_ref : (1, Cin, Lp)     zero-padded flat input (Lp = pad + H*W + pad_r)
    w_ref : (Cout, k*k*Cin)  conv weight, tap-major index (i*k + j)*Cin + c
    pp_ref: (Cout, 3)        packed per-channel params [bias | bn_scale | bn_shift]
    o_ref : (1, Cout, H*W)   lane-dense output block
    """
    Cin = x_ref.shape[1]
    Cout = o_ref.shape[1]
    HW = H * W
    p = k // 2

    xpad = x_ref[0]            # (Cin, Lp) -- loaded once, sliced in-register
    wmat = w_ref[...]          # (Cout, k*k*Cin)
    pp = pp_ref[...]           # (Cout, 3)

    # Column index of each flat output position, for masking W-border taps
    # (H-border out-of-range reads land in the zero padding automatically).
    pos = lax.broadcasted_iota(jnp.int32, (1, HW), 1)
    wpos = pos % W
    col_masks = {}
    for dj in range(-p, p + 1):
        if dj < 0:
            col_masks[dj] = wpos >= -dj
        elif dj > 0:
            col_masks[dj] = wpos < W - dj
        else:
            col_masks[dj] = None

    acc = jnp.zeros((Cout, HW), jnp.float32)
    for i in range(k):
        for j in range(k):
            di, dj = i - p, j - p
            off = pad + di * W + dj            # static, >= 0 by construction
            xs = xpad[:, off:off + HW]         # (Cin, HW) shifted view
            m = col_masks[dj]
            if m is not None:
                xs = jnp.where(m, xs, 0.0)
            base = (i * k + j) * Cin
            for c in range(Cin):
                wcol = wmat[:, base + c:base + c + 1]   # (Cout, 1)
                acc = acc + wcol * xs[c:c + 1, :]       # VPU outer-product FMA

    bias = pp[:, 0:1]
    scale = pp[:, 1:2]
    shift = pp[:, 2:3]
    y = (acc + bias) * scale + shift           # conv bias, then eval-mode BN
    y = jnp.maximum(y, 0.0)                    # ReLU
    o_ref[0] = y.astype(o_ref.dtype)


def basic_block_pallas(x_nchw, w_oihw, b, bn_scale, bn_shift, *,
                       kernel_size=3, stride=1):
    # TODO(synk): stride > 1 path (spatial downsample) not implemented.
    assert stride == 1, "only stride == 1 is implemented"
    N, Cin, H, W = x_nchw.shape
    Cout = w_oihw.shape[0]
    k = kernel_size
    p = k // 2
    HW = H * W

    # Flatten spatial and zero-pad the flat axis so every conv tap becomes a
    # static in-register lane slice (layout plumbing only, no compute hoisted).
    pad = p * (W + 1)
    pad_r = pad + (-(HW + 2 * pad)) % 128      # round lane count to mult. of 128
    x_flat = x_nchw.reshape(N, Cin, HW)
    x_pad = jnp.pad(x_flat, ((0, 0), (0, 0), (pad, pad_r)))
    Lp = HW + pad + pad_r

    # (Cout, Cin, k, k) -> (Cout, k, k, Cin) -> (Cout, k*k*Cin), tap-major.
    w_flat = jnp.transpose(w_oihw, (0, 2, 3, 1)).reshape(Cout, k * k * Cin)
    # Pack all per-channel vectors into a single array -> one DMA.
    pp = jnp.stack([b, bn_scale, bn_shift], axis=1).astype(jnp.float32)  # (Cout,3)

    kern = partial(basic_block_kernel, k=k, H=H, W=W, pad=pad)
    out_flat = pl.pallas_call(
        kern,
        out_shape=jax.ShapeDtypeStruct((N, Cout, HW), x_nchw.dtype),
        grid_spec=pltpu.PrefetchScalarGridSpec(
            num_scalar_prefetch=0,
            grid=(N,),      # "parallel" batch axis -> both v7x TCs; no-op v5e/v6e
            in_specs=[
                pl.BlockSpec((1, Cin, Lp), lambda n: (n, 0, 0)),
                pl.BlockSpec((Cout, k * k * Cin), lambda n: (0, 0)),
                pl.BlockSpec((Cout, 3), lambda n: (0, 0)),
            ],
            out_specs=pl.BlockSpec((1, Cout, HW), lambda n: (n, 0, 0)),
        ),
        compiler_params=pltpu.CompilerParams(
            dimension_semantics=("parallel",)),
    )(x_pad, w_flat, pp)
    return out_flat.reshape(N, Cout, H, W)


def basic_block_ref(x_nchw, w_oihw, b, bn_scale, bn_shift, *,
                    kernel_size=3, stride=1):
    """Pure-JAX reference (NCHW, eval-mode BN)."""
    p = kernel_size // 2
    y = lax.conv_general_dilated(
        x_nchw, w_oihw, window_strides=(stride, stride),
        padding=[(p, p), (p, p)],
        dimension_numbers=('NCHW', 'OIHW', 'NCHW'),
        precision=lax.Precision.HIGHEST)
    y = y + b.reshape(1, -1, 1, 1)
    y = y * bn_scale.reshape(1, -1, 1, 1) + bn_shift.reshape(1, -1, 1, 1)
    return jnp.maximum(y, 0.0)


if __name__ == "__main__":
    # BasicBlock(in_channels=4, out_channels=8, kernel_size=3, stride=1)
    N, Cin, H, W = 2, 4, 16, 16
    Cout, k, stride = 8, 3, 1

    key = jax.random.PRNGKey(0)
    ks = jax.random.split(key, 7)

    # deterministic synthetic parameters (not a checkpoint load)
    w = jax.random.normal(ks[0], (Cout, Cin, k, k), jnp.float32) * 0.2
    b = jax.random.normal(ks[1], (Cout,), jnp.float32) * 0.1

    # BatchNorm2d (eval mode) -> folded per-channel scale/shift.
    # TODO(synk): training-mode BN (batch statistics) not implemented.
    gamma = 1.0 + 0.1 * jax.random.normal(ks[2], (Cout,), jnp.float32)
    beta = 0.1 * jax.random.normal(ks[3], (Cout,), jnp.float32)
    run_mean = 0.1 * jax.random.normal(ks[4], (Cout,), jnp.float32)
    run_var = 0.5 + jnp.abs(jax.random.normal(ks[5], (Cout,), jnp.float32))
    eps = 1e-5
    bn_scale = gamma / jnp.sqrt(run_var + eps)
    bn_shift = beta - run_mean * bn_scale

    # input in PyTorch NCHW convention (kernel works on NCHW directly)
    x = jax.random.normal(ks[6], (N, Cin, H, W), jnp.float32)

    out = basic_block_pallas(x, w, b, bn_scale, bn_shift,
                             kernel_size=k, stride=stride)
    out = jax.block_until_ready(out)

    ref = basic_block_ref(x, w, b, bn_scale, bn_shift,
                          kernel_size=k, stride=stride)
    ref = jax.block_until_ready(ref)

    assert out.shape == (N, Cout, H, W)
    max_err = float(jnp.max(jnp.abs(out - ref)))
    assert max_err < 2e-3, f"mismatch vs reference: {max_err}"

    print("KERNEL_OK")
</pallas_src>

<mosaic_0001>
module attributes {stable_mosaic.version = 11 : i64} {
  func.func @basic_block_kernel(%arg0: i32, %arg1: memref<1x4x384xf32, #tpu.memory_space<vmem>>, %arg2: memref<8x36xf32, #tpu.memory_space<vmem>>, %arg3: memref<8x3xf32, #tpu.memory_space<vmem>>, %arg4: memref<1x8x256xf32, #tpu.memory_space<vmem>>) attributes {dimension_semantics = [#tpu.dimension_semantics<parallel>], iteration_bounds = array<i64: 2>, scalar_prefetch = 0 : i64, scratch_operands = 0 : i64, tpu.core_type = #tpu.core_type<tc>, window_params = [{transform_indices = @transform_0, window_bounds = array<i64: 1, 4, 384>}, {pipeline_mode = #tpu.pipeline_mode<synchronous>, transform_indices = @transform_1, window_bounds = array<i64: 8, 36>}, {pipeline_mode = #tpu.pipeline_mode<synchronous>, transform_indices = @transform_2, window_bounds = array<i64: 8, 3>}, {transform_indices = @transform_3, window_bounds = array<i64: 1, 8, 256>}]} {
    %c0 = arith.constant 0 : index
    %c0_0 = arith.constant 0 : index
    %c0_1 = arith.constant 0 : index
    %0 = vector.load %arg1[%c0, %c0_0, %c0_1] : memref<1x4x384xf32, #tpu.memory_space<vmem>>, vector<1x4x384xf32>
    %1 = vector.shape_cast %0 : vector<1x4x384xf32> to vector<4x384xf32>
    %c0_2 = arith.constant 0 : index
    %c0_3 = arith.constant 0 : index
    %2 = vector.load %arg2[%c0_2, %c0_3] : memref<8x36xf32, #tpu.memory_space<vmem>>, vector<8x36xf32>
    %c0_4 = arith.constant 0 : index
    %c0_5 = arith.constant 0 : index
    %3 = vector.load %arg3[%c0_4, %c0_5] : memref<8x3xf32, #tpu.memory_space<vmem>>, vector<8x3xf32>
    %4 = tpu.iota {dimensions = array<i32: 1>} : vector<1x256xi32>
    %c16_i32 = arith.constant 16 : i32
    %c0_i32 = arith.constant 0 : i32
    %5 = arith.cmpi eq, %c16_i32, %c0_i32 : i32
    %c1_i32 = arith.constant 1 : i32
    %6 = arith.select %5, %c1_i32, %c16_i32 : i32
    %7 = vector.broadcast %6 : i32 to vector<1x256xi32>
    %8 = arith.remsi %4, %7 : vector<1x256xi32>
    %c0_i32_6 = arith.constant 0 : i32
    %9 = vector.broadcast %c0_i32_6 : i32 to vector<1x256xi32>
    %10 = arith.cmpi ne, %8, %9 : vector<1x256xi32>
    %c0_i32_7 = arith.constant 0 : i32
    %11 = vector.broadcast %c0_i32_7 : i32 to vector<1x256xi32>
    %12 = arith.cmpi slt, %8, %11 : vector<1x256xi32>
    %c0_i32_8 = arith.constant 0 : i32
    %13 = arith.cmpi slt, %6, %c0_i32_8 : i32
    %14 = vector.broadcast %13 : i1 to vector<1x256xi1>
    %15 = vector.broadcast %14 : vector<1x256xi1> to vector<1x256xi1>
    %16 = arith.xori %12, %15 : vector<1x256xi1>
    %17 = arith.andi %16, %10 : vector<1x256xi1>
    %18 = vector.broadcast %6 : i32 to vector<1x256xi32>
    %19 = arith.addi %8, %18 : vector<1x256xi32>
    %20 = arith.select %17, %19, %8 : vector<1x256xi1>, vector<1x256xi32>
    %c1_i32_9 = arith.constant 1 : i32
    %21 = vector.broadcast %c1_i32_9 : i32 to vector<1x256xi32>
    %22 = arith.cmpi sge, %20, %21 : vector<1x256xi32>
    %c15_i32 = arith.constant 15 : i32
    %23 = vector.broadcast %c15_i32 : i32 to vector<1x256xi32>
    %24 = arith.cmpi slt, %20, %23 : vector<1x256xi32>
    %cst = arith.constant 0.000000e+00 : f32
    %25 = vector.broadcast %cst : f32 to vector<8x256xf32>
    %26 = vector.extract_strided_slice %1 {offsets = [0, 0], sizes = [4, 256], strides = [1, 1]} : vector<4x384xf32> to vector<4x256xf32>
    %cst_10 = arith.constant 0.000000e+00 : f32
    %27 = vector.shape_cast %22 : vector<1x256xi1> to vector<1x256xi1>
    %28 = vector.broadcast %27 : vector<1x256xi1> to vector<4x256xi1>
    %29 = vector.broadcast %cst_10 : f32 to vector<4x256xf32>
    %30 = arith.select %28, %26, %29 : vector<4x256xi1>, vector<4x256xf32>
    %31 = vector.extract_strided_slice %2 {offsets = [0, 0], sizes = [8, 1], strides = [1, 1]} : vector<8x36xf32> to vector<8x1xf32>
    %32 = vector.extract_strided_slice %30 {offsets = [0, 0], sizes = [1, 256], strides = [1, 1]} : vector<4x256xf32> to vector<1x256xf32>
    %33 = vector.broadcast %31 : vector<8x1xf32> to vector<8x256xf32>
    %34 = vector.broadcast %32 : vector<1x256xf32> to vector<8x256xf32>
    %35 = arith.mulf %33, %34 : vector<8x256xf32>
    %36 = arith.addf %25, %35 : vector<8x256xf32>
    %37 = vector.extract_strided_slice %2 {offsets = [0, 1], sizes = [8, 1], strides = [1, 1]} : vector<8x36xf32> to vector<8x1xf32>
    %38 = vector.extract_strided_slice %30 {offsets = [1, 0], sizes = [1, 256], strides = [1, 1]} : vector<4x256xf32> to vector<1x256xf32>
    %39 = vector.broadcast %37 : vector<8x1xf32> to vector<8x256xf32>
    %40 = vector.broadcast %38 : vector<1x256xf32> to vector<8x256xf32>
    %41 = arith.mulf %39, %40 : vector<8x256xf32>
    %42 = arith.addf %36, %41 : vector<8x256xf32>
    %43 = vector.extract_strided_slice %2 {offsets = [0, 2], sizes = [8, 1], strides = [1, 1]} : vector<8x36xf32> to vector<8x1xf32>
    %44 = vector.extract_strided_slice %30 {offsets = [2, 0], sizes = [1, 256], strides = [1, 1]} : vector<4x256xf32> to vector<1x256xf32>
    %45 = vector.broadcast %43 : vector<8x1xf32> to vector<8x256xf32>
    %46 = vector.broadcast %44 : vector<1x256xf32> to vector<8x256xf32>
    %47 = arith.mulf %45, %46 : vector<8x256xf32>
    %48 = arith.addf %42, %47 : vector<8x256xf32>
    %49 = vector.extract_strided_slice %2 {offsets = [0, 3], sizes = [8, 1], strides = [1, 1]} : vector<8x36xf32> to vector<8x1xf32>
    %50 = vector.extract_strided_slice %30 {offsets = [3, 0], sizes = [1, 256], strides = [1, 1]} : vector<4x256xf32> to vector<1x256xf32>
    %51 = vector.broadcast %49 : vector<8x1xf32> to vector<8x256xf32>
    %52 = vector.broadcast %50 : vector<1x256xf32> to vector<8x256xf32>
    %53 = arith.mulf %51, %52 : vector<8x256xf32>
    %54 = arith.addf %48, %53 : vector<8x256xf32>
    %55 = vector.extract_strided_slice %1 {offsets = [0, 1], sizes = [4, 256], strides = [1, 1]} : vector<4x384xf32> to vector<4x256xf32>
    %56 = vector.extract_strided_slice %2 {offsets = [0, 4], sizes = [8, 1], strides = [1, 1]} : vector<8x36xf32> to vector<8x1xf32>
    %57 = vector.extract_strided_slice %55 {offsets = [0, 0], sizes = [1, 256], strides = [1, 1]} : vector<4x256xf32> to vector<1x256xf32>
    %58 = vector.broadcast %56 : vector<8x1xf32> to vector<8x256xf32>
    %59 = vector.broadcast %57 : vector<1x256xf32> to vector<8x256xf32>
    %60 = arith.mulf %58, %59 : vector<8x256xf32>
    %61 = arith.addf %54, %60 : vector<8x256xf32>
    %62 = vector.extract_strided_slice %2 {offsets = [0, 5], sizes = [8, 1], strides = [1, 1]} : vector<8x36xf32> to vector<8x1xf32>
    %63 = vector.extract_strided_slice %55 {offsets = [1, 0], sizes = [1, 256], strides = [1, 1]} : vector<4x256xf32> to vector<1x256xf32>
    %64 = vector.broadcast %62 : vector<8x1xf32> to vector<8x256xf32>
    %65 = vector.broadcast %63 : vector<1x256xf32> to vector<8x256xf32>
    %66 = arith.mulf %64, %65 : vector<8x256xf32>
    %67 = arith.addf %61, %66 : vector<8x256xf32>
    %68 = vector.extract_strided_slice %2 {offsets = [0, 6], sizes = [8, 1], strides = [1, 1]} : vector<8x36xf32> to vector<8x1xf32>
    %69 = vector.extract_strided_slice %55 {offsets = [2, 0], sizes = [1, 256], strides = [1, 1]} : vector<4x256xf32> to vector<1x256xf32>
    %70 = vector.broadcast %68 : vector<8x1xf32> to vector<8x256xf32>
    %71 = vector.broadcast %69 : vector<1x256xf32> to vector<8x256xf32>
    %72 = arith.mulf %70, %71 : vector<8x256xf32>
    %73 = arith.addf %67, %72 : vector<8x256xf32>
    %74 = vector.extract_strided_slice %2 {offsets = [0, 7], sizes = [8, 1], strides = [1, 1]} : vector<8x36xf32> to vector<8x1xf32>
    %75 = vector.extract_strided_slice %55 {offsets = [3, 0], sizes = [1, 256], strides = [1, 1]} : vector<4x256xf32> to vector<1x256xf32>
    %76 = vector.broadcast %74 : vector<8x1xf32> to vector<8x256xf32>
    %77 = vector.broadcast %75 : vector<1x256xf32> to vector<8x256xf32>
    %78 = arith.mulf %76, %77 : vector<8x256xf32>
    %79 = arith.addf %73, %78 : vector<8x256xf32>
    %80 = vector.extract_strided_slice %1 {offsets = [0, 2], sizes = [4, 256], strides = [1, 1]} : vector<4x384xf32> to vector<4x256xf32>
    %cst_11 = arith.constant 0.000000e+00 : f32
    %81 = vector.shape_cast %24 : vector<1x256xi1> to vector<1x256xi1>
    %82 = vector.broadcast %81 : vector<1x256xi1> to vector<4x256xi1>
    %83 = vector.broadcast %cst_11 : f32 to vector<4x256xf32>
    %84 = arith.select %82, %80, %83 : vector<4x256xi1>, vector<4x256xf32>
    %85 = vector.extract_strided_slice %2 {offsets = [0, 8], sizes = [8, 1], strides = [1, 1]} : vector<8x36xf32> to vector<8x1xf32>
    %86 = vector.extract_strided_slice %84 {offsets = [0, 0], sizes = [1, 256], strides = [1, 1]} : vector<4x256xf32> to vector<1x256xf32>
    %87 = vector.broadcast %85 : vector<8x1xf32> to vector<8x256xf32>
    %88 = vector.broadcast %86 : vector<1x256xf32> to vector<8x256xf32>
    %89 = arith.mulf %87, %88 : vector<8x256xf32>
    %90 = arith.addf %79, %89 : vector<8x256xf32>
    %91 = vector.extract_strided_slice %2 {offsets = [0, 9], sizes = [8, 1], strides = [1, 1]} : vector<8x36xf32> to vector<8x1xf32>
    %92 = vector.extract_strided_slice %84 {offsets = [1, 0], sizes = [1, 256], strides = [1, 1]} : vector<4x256xf32> to vector<1x256xf32>
    %93 = vector.broadcast %91 : vector<8x1xf32> to vector<8x256xf32>
    %94 = vector.broadcast %92 : vector<1x256xf32> to vector<8x256xf32>
    %95 = arith.mulf %93, %94 : vector<8x256xf32>
    %96 = arith.addf %90, %95 : vector<8x256xf32>
    %97 = vector.extract_strided_slice %2 {offsets = [0, 10], sizes = [8, 1], strides = [1, 1]} : vector<8x36xf32> to vector<8x1xf32>
    %98 = vector.extract_strided_slice %84 {offsets = [2, 0], sizes = [1, 256], strides = [1, 1]} : vector<4x256xf32> to vector<1x256xf32>
    %99 = vector.broadcast %97 : vector<8x1xf32> to vector<8x256xf32>
    %100 = vector.broadcast %98 : vector<1x256xf32> to vector<8x256xf32>
    %101 = arith.mulf %99, %100 : vector<8x256xf32>
    %102 = arith.addf %96, %101 : vector<8x256xf32>
    %103 = vector.extract_strided_slice %2 {offsets = [0, 11], sizes = [8, 1], strides = [1, 1]} : vector<8x36xf32> to vector<8x1xf32>
    %104 = vector.extract_strided_slice %84 {offsets = [3, 0], sizes = [1, 256], strides = [1, 1]} : vector<4x256xf32> to vector<1x256xf32>
    %105 = vector.broadcast %103 : vector<8x1xf32> to vector<8x256xf32>
    %106 = vector.broadcast %104 : vector<1x256xf32> to vector<8x256xf32>
    %107 = arith.mulf %105, %106 : vector<8x256xf32>
    %108 = arith.addf %102, %107 : vector<8x256xf32>
    %109 = vector.extract_strided_slice %1 {offsets = [0, 16], sizes = [4, 256], strides = [1, 1]} : vector<4x384xf32> to vector<4x256xf32>
    %cst_12 = arith.constant 0.000000e+00 : f32
    %110 = vector.shape_cast %22 : vector<1x256xi1> to vector<1x256xi1>
    %111 = vector.broadcast %110 : vector<1x256xi1> to vector<4x256xi1>
    %112 = vector.broadcast %cst_12 : f32 to vector<4x256xf32>
    %113 = arith.select %111, %109, %112 : vector<4x256xi1>, vector<4x256xf32>
    %114 = vector.extract_strided_slice %2 {offsets = [0, 12], sizes = [8, 1], strides = [1, 1]} : vector<8x36xf32> to vector<8x1xf32>
    %115 = vector.extract_strided_slice %113 {offsets = [0, 0], sizes = [1, 256], strides = [1, 1]} : vector<4x256xf32> to vector<1x256xf32>
    %116 = vector.broadcast %114 : vector<8x1xf32> to vector<8x256xf32>
    %117 = vector.broadcast %115 : vector<1x256xf32> to vector<8x256xf32>
    %118 = arith.mulf %116, %117 : vector<8x256xf32>
    %119 = arith.addf %108, %118 : vector<8x256xf32>
    %120 = vector.extract_strided_slice %2 {offsets = [0, 13], sizes = [8, 1], strides = [1, 1]} : vector<8x36xf32> to vector<8x1xf32>
    %121 = vector.extract_strided_slice %113 {offsets = [1, 0], sizes = [1, 256], strides = [1, 1]} : vector<4x256xf32> to vector<1x256xf32>
    %122 = vector.broadcast %120 : vector<8x1xf32> to vector<8x256xf32>
    %123 = vector.broadcast %121 : vector<1x256xf32> to vector<8x256xf32>
    %124 = arith.mulf %122, %123 : vector<8x256xf32>
    %125 = arith.addf %119, %124 : vector<8x256xf32>
    %126 = vector.extract_strided_slice %2 {offsets = [0, 14], sizes = [8, 1], strides = [1, 1]} : vector<8x36xf32> to vector<8x1xf32>
    %127 = vector.extract_strided_slice %113 {offsets = [2, 0], sizes = [1, 256], strides = [1, 1]} : vector<4x256xf32> to vector<1x256xf32>
    %128 = vector.broadcast %126 : vector<8x1xf32> to vector<8x256xf32>
    %129 = vector.broadcast %127 : vector<1x256xf32> to vector<8x256xf32>
    %130 = arith.mulf %128, %129 : vector<8x256xf32>
    %131 = arith.addf %125, %130 : vector<8x256xf32>
    %132 = vector.extract_strided_slice %2 {offsets = [0, 15], sizes = [8, 1], strides = [1, 1]} : vector<8x36xf32> to vector<8x1xf32>
    %133 = vector.extract_strided_slice %113 {offsets = [3, 0], sizes = [1, 256], strides = [1, 1]} : vector<4x256xf32> to vector<1x256xf32>
    %134 = vector.broadcast %132 : vector<8x1xf32> to vector<8x256xf32>
    %135 = vector.broadcast %133 : vector<1x256xf32> to vector<8x256xf32>
    %136 = arith.mulf %134, %135 : vector<8x256xf32>
    %137 = arith.addf %131, %136 : vector<8x256xf32>
    %138 = vector.extract_strided_slice %1 {offsets = [0, 17], sizes = [4, 256], strides = [1, 1]} : vector<4x384xf32> to vector<4x256xf32>
    %139 = vector.extract_strided_slice %2 {offsets = [0, 16], sizes = [8, 1], strides = [1, 1]} : vector<8x36xf32> to vector<8x1xf32>
    %140 = vector.extract_strided_slice %138 {offsets = [0, 0], sizes = [1, 256], strides = [1, 1]} : vector<4x256xf32> to vector<1x256xf32>
    %141 = vector.broadcast %139 : vector<8x1xf32> to vector<8x256xf32>
    %142 = vector.broadcast %140 : vector<1x256xf32> to vector<8x256xf32>
    %143 = arith.mulf %141, %142 : vector<8x256xf32>
    %144 = arith.addf %137, %143 : vector<8x256xf32>
    %145 = vector.extract_strided_slice %2 {offsets = [0, 17], sizes = [8, 1], strides = [1, 1]} : vector<8x36xf32> to vector<8x1xf32>
    %146 = vector.extract_strided_slice %138 {offsets = [1, 0], sizes = [1, 256], strides = [1, 1]} : vector<4x256xf32> to vector<1x256xf32>
    %147 = vector.broadcast %145 : vector<8x1xf32> to vector<8x256xf32>
    %148 = vector.broadcast %146 : vector<1x256xf32> to vector<8x256xf32>
    %149 = arith.mulf %147, %148 : vector<8x256xf32>
    %150 = arith.addf %144, %149 : vector<8x256xf32>
    %151 = vector.extract_strided_slice %2 {offsets = [0, 18], sizes = [8, 1], strides = [1, 1]} : vector<8x36xf32> to vector<8x1xf32>
    %152 = vector.extract_strided_slice %138 {offsets = [2, 0], sizes = [1, 256], strides = [1, 1]} : vector<4x256xf32> to vector<1x256xf32>
    %153 = vector.broadcast %151 : vector<8x1xf32> to vector<8x256xf32>
    %154 = vector.broadcast %152 : vector<1x256xf32> to vector<8x256xf32>
    %155 = arith.mulf %153, %154 : vector<8x256xf32>
    %156 = arith.addf %150, %155 : vector<8x256xf32>
    %157 = vector.extract_strided_slice %2 {offsets = [0, 19], sizes = [8, 1], strides = [1, 1]} : vector<8x36xf32> to vector<8x1xf32>
    %158 = vector.extract_strided_slice %138 {offsets = [3, 0], sizes = [1, 256], strides = [1, 1]} : vector<4x256xf32> to vector<1x256xf32>
    %159 = vector.broadcast %157 : vector<8x1xf32> to vector<8x256xf32>
    %160 = vector.broadcast %158 : vector<1x256xf32> to vector<8x256xf32>
    %161 = arith.mulf %159, %160 : vector<8x256xf32>
    %162 = arith.addf %156, %161 : vector<8x256xf32>
    %163 = vector.extract_strided_slice %1 {offsets = [0, 18], sizes = [4, 256], strides = [1, 1]} : vector<4x384xf32> to vector<4x256xf32>
    %cst_13 = arith.constant 0.000000e+00 : f32
    %164 = vector.shape_cast %24 : vector<1x256xi1> to vector<1x256xi1>
    %165 = vector.broadcast %164 : vector<1x256xi1> to vector<4x256xi1>
    %166 = vector.broadcast %cst_13 : f32 to vector<4x256xf32>
    %167 = arith.select %165, %163, %166 : vector<4x256xi1>, vector<4x256xf32>
    %168 = vector.extract_strided_slice %2 {offsets = [0, 20], sizes = [8, 1], strides = [1, 1]} : vector<8x36xf32> to vector<8x1xf32>
    %169 = vector.extract_strided_slice %167 {offsets = [0, 0], sizes = [1, 256], strides = [1, 1]} : vector<4x256xf32> to vector<1x256xf32>
    %170 = vector.broadcast %168 : vector<8x1xf32> to vector<8x256xf32>
    %171 = vector.broadcast %169 : vector<1x256xf32> to vector<8x256xf32>
    %172 = arith.mulf %170, %171 : vector<8x256xf32>
    %173 = arith.addf %162, %172 : vector<8x256xf32>
    %174 = vector.extract_strided_slice %2 {offsets = [0, 21], sizes = [8, 1], strides = [1, 1]} : vector<8x36xf32> to vector<8x1xf32>
    %175 = vector.extract_strided_slice %167 {offsets = [1, 0], sizes = [1, 256], strides = [1, 1]} : vector<4x256xf32> to vector<1x256xf32>
    %176 = vector.broadcast %174 : vector<8x1xf32> to vector<8x256xf32>
    %177 = vector.broadcast %175 : vector<1x256xf32> to vector<8x256xf32>
    %178 = arith.mulf %176, %177 : vector<8x256xf32>
    %179 = arith.addf %173, %178 : vector<8x256xf32>
    %180 = vector.extract_strided_slice %2 {offsets = [0, 22], sizes = [8, 1], strides = [1, 1]} : vector<8x36xf32> to vector<8x1xf32>
    %181 = vector.extract_strided_slice %167 {offsets = [2, 0], sizes = [1, 256], strides = [1, 1]} : vector<4x256xf32> to vector<1x256xf32>
    %182 = vector.broadcast %180 : vector<8x1xf32> to vector<8x256xf32>
    %183 = vector.broadcast %181 : vector<1x256xf32> to vector<8x256xf32>
    %184 = arith.mulf %182, %183 : vector<8x256xf32>
    %185 = arith.addf %179, %184 : vector<8x256xf32>
    %186 = vector.extract_strided_slice %2 {offsets = [0, 23], sizes = [8, 1], strides = [1, 1]} : vector<8x36xf32> to vector<8x1xf32>
    %187 = vector.extract_strided_slice %167 {offsets = [3, 0], sizes = [1, 256], strides = [1, 1]} : vector<4x256xf32> to vector<1x256xf32>
    %188 = vector.broadcast %186 : vector<8x1xf32> to vector<8x256xf32>
    %189 = vector.broadcast %187 : vector<1x256xf32> to vector<8x256xf32>
    %190 = arith.mulf %188, %189 : vector<8x256xf32>
    %191 = arith.addf %185, %190 : vector<8x256xf32>
    %192 = vector.extract_strided_slice %1 {offsets = [0, 32], sizes = [4, 256], strides = [1, 1]} : vector<4x384xf32> to vector<4x256xf32>
    %cst_14 = arith.constant 0.000000e+00 : f32
    %193 = vector.shape_cast %22 : vector<1x256xi1> to vector<1x256xi1>
    %194 = vector.broadcast %193 : vector<1x256xi1> to vector<4x256xi1>
    %195 = vector.broadcast %cst_14 : f32 to vector<4x256xf32>
    %196 = arith.select %194, %192, %195 : vector<4x256xi1>, vector<4x256xf32>
    %197 = vector.extract_strided_slice %2 {offsets = [0, 24], sizes = [8, 1], strides = [1, 1]} : vector<8x36xf32> to vector<8x1xf32>
    %198 = vector.extract_strided_slice %196 {offsets = [0, 0], sizes = [1, 256], strides = [1, 1]} : vector<4x256xf32> to vector<1x256xf32>
    %199 = vector.broadcast %197 : vector<8x1xf32> to vector<8x256xf32>
    %200 = vector.broadcast %198 : vector<1x256xf32> to vector<8x256xf32>
    %201 = arith.mulf %199, %200 : vector<8x256xf32>
    %202 = arith.addf %191, %201 : vector<8x256xf32>
    %203 = vector.extract_strided_slice %2 {offsets = [0, 25], sizes = [8, 1], strides = [1, 1]} : vector<8x36xf32> to vector<8x1xf32>
    %204 = vector.extract_strided_slice %196 {offsets = [1, 0], sizes = [1, 256], strides = [1, 1]} : vector<4x256xf32> to vector<1x256xf32>
    %205 = vector.broadcast %203 : vector<8x1xf32> to vector<8x256xf32>
    %206 = vector.broadcast %204 : vector<1x256xf32> to vector<8x256xf32>
    %207 = arith.mulf %205, %206 : vector<8x256xf32>
    %208 = arith.addf %202, %207 : vector<8x256xf32>
    %209 = vector.extract_strided_slice %2 {offsets = [0, 26], sizes = [8, 1], strides = [1, 1]} : vector<8x36xf32> to vector<8x1xf32>
    %210 = vector.extract_strided_slice %196 {offsets = [2, 0], sizes = [1, 256], strides = [1, 1]} : vector<4x256xf32> to vector<1x256xf32>
    %211 = vector.broadcast %209 : vector<8x1xf32> to vector<8x256xf32>
    %212 = vector.broadcast %210 : vector<1x256xf32> to vector<8x256xf32>
    %213 = arith.mulf %211, %212 : vector<8x256xf32>
    %214 = arith.addf %208, %213 : vector<8x256xf32>
    %215 = vector.extract_strided_slice %2 {offsets = [0, 27], sizes = [8, 1], strides = [1, 1]} : vector<8x36xf32> to vector<8x1xf32>
    %216 = vector.extract_strided_slice %196 {offsets = [3, 0], sizes = [1, 256], strides = [1, 1]} : vector<4x256xf32> to vector<1x256xf32>
    %217 = vector.broadcast %215 : vector<8x1xf32> to vector<8x256xf32>
    %218 = vector.broadcast %216 : vector<1x256xf32> to vector<8x256xf32>
    %219 = arith.mulf %217, %218 : vector<8x256xf32>
    %220 = arith.addf %214, %219 : vector<8x256xf32>
    %221 = vector.extract_strided_slice %1 {offsets = [0, 33], sizes = [4, 256], strides = [1, 1]} : vector<4x384xf32> to vector<4x256xf32>
    %222 = vector.extract_strided_slice %2 {offsets = [0, 28], sizes = [8, 1], strides = [1, 1]} : vector<8x36xf32> to vector<8x1xf32>
    %223 = vector.extract_strided_slice %221 {offsets = [0, 0], sizes = [1, 256], strides = [1, 1]} : vector<4x256xf32> to vector<1x256xf32>
    %224 = vector.broadcast %222 : vector<8x1xf32> to vector<8x256xf32>
    %225 = vector.broadcast %223 : vector<1x256xf32> to vector<8x256xf32>
    %226 = arith.mulf %224, %225 : vector<8x256xf32>
    %227 = arith.addf %220, %226 : vector<8x256xf32>
    %228 = vector.extract_strided_slice %2 {offsets = [0, 29], sizes = [8, 1], strides = [1, 1]} : vector<8x36xf32> to vector<8x1xf32>
    %229 = vector.extract_strided_slice %221 {offsets = [1, 0], sizes = [1, 256], strides = [1, 1]} : vector<4x256xf32> to vector<1x256xf32>
    %230 = vector.broadcast %228 : vector<8x1xf32> to vector<8x256xf32>
    %231 = vector.broadcast %229 : vector<1x256xf32> to vector<8x256xf32>
    %232 = arith.mulf %230, %231 : vector<8x256xf32>
    %233 = arith.addf %227, %232 : vector<8x256xf32>
    %234 = vector.extract_strided_slice %2 {offsets = [0, 30], sizes = [8, 1], strides = [1, 1]} : vector<8x36xf32> to vector<8x1xf32>
    %235 = vector.extract_strided_slice %221 {offsets = [2, 0], sizes = [1, 256], strides = [1, 1]} : vector<4x256xf32> to vector<1x256xf32>
    %236 = vector.broadcast %234 : vector<8x1xf32> to vector<8x256xf32>
    %237 = vector.broadcast %235 : vector<1x256xf32> to vector<8x256xf32>
    %238 = arith.mulf %236, %237 : vector<8x256xf32>
    %239 = arith.addf %233, %238 : vector<8x256xf32>
    %240 = vector.extract_strided_slice %2 {offsets = [0, 31], sizes = [8, 1], strides = [1, 1]} : vector<8x36xf32> to vector<8x1xf32>
    %241 = vector.extract_strided_slice %221 {offsets = [3, 0], sizes = [1, 256], strides = [1, 1]} : vector<4x256xf32> to vector<1x256xf32>
    %242 = vector.broadcast %240 : vector<8x1xf32> to vector<8x256xf32>
    %243 = vector.broadcast %241 : vector<1x256xf32> to vector<8x256xf32>
    %244 = arith.mulf %242, %243 : vector<8x256xf32>
    %245 = arith.addf %239, %244 : vector<8x256xf32>
    %246 = vector.extract_strided_slice %1 {offsets = [0, 34], sizes = [4, 256], strides = [1, 1]} : vector<4x384xf32> to vector<4x256xf32>
    %cst_15 = arith.constant 0.000000e+00 : f32
    %247 = vector.shape_cast %24 : vector<1x256xi1> to vector<1x256xi1>
    %248 = vector.broadcast %247 : vector<1x256xi1> to vector<4x256xi1>
    %249 = vector.broadcast %cst_15 : f32 to vector<4x256xf32>
    %250 = arith.select %248, %246, %249 : vector<4x256xi1>, vector<4x256xf32>
    %251 = vector.extract_strided_slice %2 {offsets = [0, 32], sizes = [8, 1], strides = [1, 1]} : vector<8x36xf32> to vector<8x1xf32>
    %252 = vector.extract_strided_slice %250 {offsets = [0, 0], sizes = [1, 256], strides = [1, 1]} : vector<4x256xf32> to vector<1x256xf32>
    %253 = vector.broadcast %251 : vector<8x1xf32> to vector<8x256xf32>
    %254 = vector.broadcast %252 : vector<1x256xf32> to vector<8x256xf32>
    %255 = arith.mulf %253, %254 : vector<8x256xf32>
    %256 = arith.addf %245, %255 : vector<8x256xf32>
    %257 = vector.extract_strided_slice %2 {offsets = [0, 33], sizes = [8, 1], strides = [1, 1]} : vector<8x36xf32> to vector<8x1xf32>
    %258 = vector.extract_strided_slice %250 {offsets = [1, 0], sizes = [1, 256], strides = [1, 1]} : vector<4x256xf32> to vector<1x256xf32>
    %259 = vector.broadcast %257 : vector<8x1xf32> to vector<8x256xf32>
    %260 = vector.broadcast %258 : vector<1x256xf32> to vector<8x256xf32>
    %261 = arith.mulf %259, %260 : vector<8x256xf32>
    %262 = arith.addf %256, %261 : vector<8x256xf32>
    %263 = vector.extract_strided_slice %2 {offsets = [0, 34], sizes = [8, 1], strides = [1, 1]} : vector<8x36xf32> to vector<8x1xf32>
    %264 = vector.extract_strided_slice %250 {offsets = [2, 0], sizes = [1, 256], strides = [1, 1]} : vector<4x256xf32> to vector<1x256xf32>
    %265 = vector.broadcast %263 : vector<8x1xf32> to vector<8x256xf32>
    %266 = vector.broadcast %264 : vector<1x256xf32> to vector<8x256xf32>
    %267 = arith.mulf %265, %266 : vector<8x256xf32>
    %268 = arith.addf %262, %267 : vector<8x256xf32>
    %269 = vector.extract_strided_slice %2 {offsets = [0, 35], sizes = [8, 1], strides = [1, 1]} : vector<8x36xf32> to vector<8x1xf32>
    %270 = vector.extract_strided_slice %250 {offsets = [3, 0], sizes = [1, 256], strides = [1, 1]} : vector<4x256xf32> to vector<1x256xf32>
    %271 = vector.broadcast %269 : vector<8x1xf32> to vector<8x256xf32>
    %272 = vector.broadcast %270 : vector<1x256xf32> to vector<8x256xf32>
    %273 = arith.mulf %271, %272 : vector<8x256xf32>
    %274 = arith.addf %268, %273 : vector<8x256xf32>
    %275 = vector.extract_strided_slice %3 {offsets = [0, 0], sizes = [8, 1], strides = [1, 1]} : vector<8x3xf32> to vector<8x1xf32>
    %276 = vector.extract_strided_slice %3 {offsets = [0, 1], sizes = [8, 1], strides = [1, 1]} : vector<8x3xf32> to vector<8x1xf32>
    %277 = vector.extract_strided_slice %3 {offsets = [0, 2], sizes = [8, 1], strides = [1, 1]} : vector<8x3xf32> to vector<8x1xf32>
    %278 = vector.broadcast %275 : vector<8x1xf32> to vector<8x256xf32>
    %279 = arith.addf %274, %278 : vector<8x256xf32>
    %280 = vector.broadcast %276 : vector<8x1xf32> to vector<8x256xf32>
    %281 = arith.mulf %279, %280 : vector<8x256xf32>
    %282 = vector.broadcast %277 : vector<8x1xf32> to vector<8x256xf32>
    %283 = arith.addf %281, %282 : vector<8x256xf32>
    %cst_16 = arith.constant 0.000000e+00 : f32
    %284 = vector.broadcast %cst_16 : f32 to vector<8x256xf32>
    %285 = arith.maximumf %283, %284 : vector<8x256xf32>
    %c0_17 = arith.constant 0 : index
    %c0_18 = arith.constant 0 : index
    %c0_19 = arith.constant 0 : index
    %286 = vector.load %arg4[%c0_17, %c0_18, %c0_19] : memref<1x8x256xf32, #tpu.memory_space<vmem>>, vector<1x8x256xf32>
    %287 = vector.shape_cast %286 : vector<1x8x256xf32> to vector<8x256xf32>
    %288 = vector.shape_cast %285 : vector<8x256xf32> to vector<1x8x256xf32>
    tpu.vector_store %arg4[%c0_17, %c0_18, %c0_19], %288 {strides = array<i32>} : memref<1x8x256xf32, #tpu.memory_space<vmem>>, vector<1x8x256xf32>,
    return
  }
  func.func @transform_0(%arg0: i32) -> (i32, i32, i32) {
    %c0_i32 = arith.constant 0 : i32
    %c0_i32_0 = arith.constant 0 : i32
    %c0_i32_1 = arith.constant 0 : i32
    return %arg0, %c0_i32, %c0_i32_0 : i32, i32, i32
  }
  func.func @transform_1(%arg0: i32) -> (i32, i32) {
    %c0_i32 = arith.constant 0 : i32
    %c0_i32_0 = arith.constant 0 : i32
    %c0_i32_1 = arith.constant 0 : i32
    return %c0_i32, %c0_i32_0 : i32, i32
  }
  func.func @transform_2(%arg0: i32) -> (i32, i32) {
    %c0_i32 = arith.constant 0 : i32
    %c0_i32_0 = arith.constant 0 : i32
    %c0_i32_1 = arith.constant 0 : i32
    return %c0_i32, %c0_i32_0 : i32, i32
  }
  func.func @transform_3(%arg0: i32) -> (i32, i32, i32) {
    %c0_i32 = arith.constant 0 : i32
    %c0_i32_0 = arith.constant 0 : i32
    %c0_i32_1 = arith.constant 0 : i32
    return %arg0, %c0_i32, %c0_i32_0 : i32, i32, i32
  }
}

</mosaic_0001>

<llo_original>
// kernel: tpu_custom_call.1
$region0: #{tpu_custom_call.1}
  #allocation0 [shape = 'u32[]', space=smem, size = 0x4, offset = 0x4, fixed_abs, tag = 'smem constant byte address 0x4 - core index']
  #allocation1 [shape = 'u32[72,128]{1,0:T(1,128)}', space=vmem, size = 0x9000, scoped, tag = 'internal scratch']
  %s0 = inlined_call_operand.hbm [shape: f32[2,4,384], index: 0, kind: input, shape index: {}]
  %s1 = inlined_call_operand.vmem [shape: f32[8,36], index: 1, kind: input, shape index: {}]
  %s2 = inlined_call_operand.vmem [shape: f32[8,3], index: 2, kind: input, shape index: {}]
  %s3 = inlined_call_operand.hbm [shape: f32[2,8,256], index: 3, kind: output, shape index: {}]
  %s4 = sld [smem:[#allocation0]]
  $region49: #{tpu_custom_call.1} parent=0
    _
  %s6 = ssub.s32 1, %s4
  %s7 = scalar_select 0, %s6, %s4
  $region1: #{tpu_custom_call.1} parent=0
    #allocation2 [shape = 'u8[12288]{0}', space=vmem, size = 0x3000, scoped, tag = 'input window, operand 0']
    #allocation3 [shape = 's32[2]{0}', space=sflag, size = 0x8, scoped, tag = 'scoped memory for tpu_custom_call.1']
    #allocation4 [shape = 's32[2]{0}', space=sflag, size = 0x8, scoped, tag = 'scoped memory for tpu_custom_call.1']
    #allocation5 [shape = 'u8[16384]{0}', space=vmem, size = 0x4000, scoped, tag = 'output window, operand 0']
    %8 = vsyncpa [#allocation3], 0
    %s9 = scalar_lea.sflag [#allocation3], 1
    %10 = vsyncpa %s9, 0
    %11 = vsyncpa [#allocation4], 0
    %s12 = scalar_lea.sflag [#allocation4], 1
    %13 = vsyncpa %s12, 0
    loop: start=0, step=1, limit=4
    $region2: #{tpu_custom_call.1} parent=1 // loop_pre_header
      _
    $region3: #{tpu_custom_call.1} parent=1 // loop_header
      %s15 = sphi 0, %s19
      %p16 = scmp.ge.s32.totalorder %s15, 4
      %s25 = sphi 0, %s27
      %s28 = sphi 0, %s25
      %s29 = sphi 0, %s28
      %s45 = sphi 0, %s29
      %s49 = sphi 0, %s49
      %s51 = sphi 0, %s49
      %s52 = sphi 0, %s51
      %s66 = sphi 0, %s52
      %s70 = sphi 0, %s70
      %s72 = sphi 0, %s70
      %s73 = sphi 0, %s72
      %s87 = sphi 0, %s73
      %s93 = sphi 0, %s95
      %s96 = sphi 0, %s93
      %s97 = sphi 0, %s96
      %s113 = sphi 0, %s97
    $region4: #{tpu_custom_call.1} parent=1 // loop_header_branch
      %18 = sbr.rel (%p16) target = $region8
    $region5: #{tpu_custom_call.1} parent=1 // loop_body
      %s20 = ssub.s32 %s15, 1
      %s21 = ssub.s32 %s15, 2
      %s22 = sadd.s32 %s15, 1
      %s23 = ssub.s32 %s15, %s22
      %p24 = scmp.eq.s32.totalorder %s23, 0
      %s26 = sadd.s32 %s25, 1
      %s27 = scalar_select %p24, %s25, %s26
      %p30 = pneg %p24
      %p31 = scmp.eq.s32.totalorder %s15, 1
      %p32 = por %p30, %p31
      %p33 = scmp.ne.s32.totalorder %s25, %s28
      %p34 = scmp.eq.s32.totalorder %s15, 0
      %p35 = por %p33, %p34
      %p36 = scmp.ne.s32.totalorder %s25, %s28
      %p37 = scmp.eq.s32.totalorder %s20, 1
      %p38 = por %p36, %p37
      %p39 = scmp.ne.s32.totalorder %s28, %s29
      %p40 = scmp.eq.s32.totalorder %s20, 0
      %p41 = por %p39, %p40
      %p42 = scmp.ne.s32.totalorder %s28, %s29
      %p43 = scmp.eq.s32.totalorder %s21, 1
      %p44 = por %p42, %p43
      %p46 = scmp.ne.s32.totalorder %s29, %s45
      %p47 = scmp.eq.s32.totalorder %s21, 0
      %p48 = por %p46, %p47
      %s50 = sadd.s32 %s49, 1
      %p53 = scmp.eq.s32.totalorder %s15, 1
      %p54 = scmp.ne.s32.totalorder %s49, %s51
      %p55 = scmp.eq.s32.totalorder %s15, 0
      %p56 = por %p54, %p55
      %p57 = scmp.ne.s32.totalorder %s49, %s51
      %p58 = scmp.eq.s32.totalorder %s20, 1
      %p59 = por %p57, %p58
      %p60 = scmp.ne.s32.totalorder %s51, %s52
      %p61 = scmp.eq.s32.totalorder %s20, 0
      %p62 = por %p60, %p61
      %p63 = scmp.ne.s32.totalorder %s51, %s52
      %p64 = scmp.eq.s32.totalorder %s21, 1
      %p65 = por %p63, %p64
      %p67 = scmp.ne.s32.totalorder %s52, %s66
      %p68 = scmp.eq.s32.totalorder %s21, 0
      %p69 = por %p67, %p68
      %s71 = sadd.s32 %s70, 1
      %p74 = scmp.eq.s32.totalorder %s15, 1
      %p75 = scmp.ne.s32.totalorder %s70, %s72
      %p76 = scmp.eq.s32.totalorder %s15, 0
      %p77 = por %p75, %p76
      %p78 = scmp.ne.s32.totalorder %s70, %s72
      %p79 = scmp.eq.s32.totalorder %s20, 1
      %p80 = por %p78, %p79
      %p81 = scmp.ne.s32.totalorder %s72, %s73
      %p82 = scmp.eq.s32.totalorder %s20, 0
      %p83 = por %p81, %p82
      %p84 = scmp.ne.s32.totalorder %s72, %s73
      %p85 = scmp.eq.s32.totalorder %s21, 1
      %p86 = por %p84, %p85
      %p88 = scmp.ne.s32.totalorder %s73, %s87
      %p89 = scmp.eq.s32.totalorder %s21, 0
      %p90 = por %p88, %p89
      %s91 = ssub.s32 %s15, %s22
      %p92 = scmp.eq.s32.totalorder %s91, 0
      %s94 = sadd.s32 %s93, 1
      %s95 = scalar_select %p92, %s93, %s94
      %p98 = pneg %p92
      %p99 = scmp.eq.s32.totalorder %s15, 1
      %p100 = por %p98, %p99
      %p101 = scmp.ne.s32.totalorder %s93, %s96
      %p102 = scmp.eq.s32.totalorder %s15, 0
      %p103 = por %p101, %p102
      %p104 = scmp.ne.s32.totalorder %s93, %s96
      %p105 = scmp.eq.s32.totalorder %s20, 1
      %p106 = por %p104, %p105
      %p107 = scmp.ne.s32.totalorder %s96, %s97
      %p108 = scmp.eq.s32.totalorder %s20, 0
      %p109 = por %p107, %p108
      %p110 = scmp.ne.s32.totalorder %s96, %s97
      %p111 = scmp.eq.s32.totalorder %s21, 1
      %p112 = por %p110, %p111
      %p114 = scmp.ne.s32.totalorder %s97, %s113
      %p115 = scmp.eq.s32.totalorder %s21, 0
      %p116 = por %p114, %p115
      %p117 = scmp.le.s32.totalorder 1, %s15
      %p118 = scmp.lt.s32.totalorder %s15, 3
      %p119 = pnand %p117, %p118
      %p120 = pneg %p119
      // Predicated region
      $region9: #{tpu_custom_call.1} parent=5 // pred_check
        _
      $region10: #{tpu_custom_call.1} parent=5 // pred_check_branch
        %122 = sbr.rel (%p119) target = $region12
      $region11: #{tpu_custom_call.1} parent=5 // pred_region
        %s123 = ssub.s32 %s15, 1
        // Predicated region
        $region13: #{tpu_custom_call.1} parent=11 // pred_check
          %p124 = pneg %p62
        $region14: #{tpu_custom_call.1} parent=11 // pred_check_branch
          %126 = sbr.rel (%p124) target = $region16
        $region15: #{tpu_custom_call.1} parent=11 // pred_region
          _
        $region16: #{tpu_custom_call.1} parent=11 // pred_fallthru
          _
        // Predicated region
        $region17: #{tpu_custom_call.1} parent=11 // pred_check
          %p127 = pneg %p83
        $region18: #{tpu_custom_call.1} parent=11 // pred_check_branch
          %129 = sbr.rel (%p127) target = $region20
        $region19: #{tpu_custom_call.1} parent=11 // pred_region
          _
        $region20: #{tpu_custom_call.1} parent=11 // pred_fallthru
          _
      $region12: #{tpu_custom_call.1} parent=5 // pred_fallthru
        _
      %p130 = scmp.lt.s32.totalorder %s15, 2
      // Predicated region
      $region21: #{tpu_custom_call.1} parent=5 // pred_check
        %p131 = pneg %p130
      $region22: #{tpu_custom_call.1} parent=5 // pred_check_branch
        %133 = sbr.rel (%p131) target = $region24
      $region23: #{tpu_custom_call.1} parent=5 // pred_region
        // Predicated region
        $region25: #{tpu_custom_call.1} parent=23 // pred_check
          %p134 = pneg %p35
        $region26: #{tpu_custom_call.1} parent=23 // pred_check_branch
          %136 = sbr.rel (%p134) target = $region28
        $region27: #{tpu_custom_call.1} parent=23 // pred_region
          %s137 = sand.u32 %s25, 1
          %s138 = scalar_lea.sflag [#allocation3], %s137
          %s139 = sand.u32 %s25, 1
          %s140 = smul.addr %s139, 12
          %s141 = scalar_lea.vmem [#allocation2], %s140
          %143 = vsyncadd %s138, 0
          %s144 = smul.addr %s15, 3
          %s145 = smul.addr %s144, 4
          %s146 = scalar_lea.hbm %s0, %s145
          %s148 = sshll.u32 %s146, 4
          %s149 = int_to_ptr.hbm [resolvable:$true] %s148
          %s150 = sshll.u32 %s141, 4
          %s151 = int_to_ptr.vmem [resolvable:$true] %s150
          %153 = dma.hbm_to_vmem [thread:$0]  %s149, 192, %s151, %s138
        $region28: #{tpu_custom_call.1} parent=23 // pred_fallthru
          _
      $region24: #{tpu_custom_call.1} parent=5 // pred_fallthru
        _
      %p154 = scmp.le.s32.totalorder 1, %s15
      %p155 = scmp.lt.s32.totalorder %s15, 3
      %p156 = pnand %p154, %p155
      %p157 = pneg %p156
      // Predicated region
      $region29: #{tpu_custom_call.1} parent=5 // pred_check
        _
      $region30: #{tpu_custom_call.1} parent=5 // pred_check_branch
        %159 = sbr.rel (%p156) target = $region32
      $region31: #{tpu_custom_call.1} parent=5 // pred_region
        %s160 = ssub.s32 %s15, 1
        %s161 = sand.u32 %s28, 1
        %s162 = scalar_lea.sflag [#allocation3], %s161
        %s163 = sand.u32 %s28, 1
        %s164 = smul.addr %s163, 12
        %s165 = scalar_lea.vmem [#allocation2], %s164
        // Predicated region
        $region33: #{tpu_custom_call.1} parent=31 // pred_check
          %p166 = pneg %p41
        $region34: #{tpu_custom_call.1} parent=31 // pred_check_branch
          %168 = sbr.rel (%p166) target = $region36
        $region35: #{tpu_custom_call.1} parent=31 // pred_region
          %170 = dma.done %s162, 192
        $region36: #{tpu_custom_call.1} parent=31 // pred_fallthru
          _
        %s171 = sand.u32 %s28, 1
        %s172 = scalar_lea.sflag [#allocation3], %s171
        %s173 = sand.u32 %s28, 1
        %s174 = smul.addr %s173, 12
        %s175 = scalar_lea.vmem [#allocation2], %s174
        %p176 = pneg %p41
        %p177 = pneg %p38
        %p178 = pneg %p62
        %p179 = pneg %p59
        %p180 = pneg %p83
        %p181 = pneg %p80
        %p182 = pneg %p109
        %p183 = pneg %p106
        %s184 = sand.u32 %s96, 1
        %s185 = scalar_lea.sflag [#allocation4], %s184
        %s186 = sand.u32 %s96, 1
        %s187 = smul.addr %s186, 16
        %s188 = scalar_lea.vmem [#allocation5], %s187
        %v189 = vld [vmem:[%s165] sm:$0xff]
        %v190 = vld [vmem:[%s165 + $0x8] sm:$0xf]
        %v191 = vld [vmem:[%s1] sm:$0xff]
        %v192 = vld [vmem:[%s2] sm:$0xff]
        %v193 = vlaneseq
        %v194 = vand.u32 %v193, 127
        %v195 = vadd.s32 %v194, 128
        %vm196 = vcmp.lt.s32.totalorder %v194, 0
        %v197 = vsub.s32 0, %v194
        %v198 = vsel %vm196, %v197, %v194
        %v199 = vshrl.u32 %v198, 4
        %v200 = vand.u32 %v198, 15
        %v201 = vsub.s32 0, %v200
        %v202 = vsel %vm196, %v201, %v200
        %vm203 = vcmp.lt.s32.totalorder %v195, 0
        %v204 = vsub.s32 0, %v195
        %v205 = vsel %vm203, %v204, %v195
        %v206 = vshrl.u32 %v205, 4
        %v207 = vand.u32 %v205, 15
        %v208 = vsub.s32 0, %v207
        %v209 = vsel %vm203, %v208, %v207
        %vm210 = vcmp.ne.s32.totalorder %v202, 0
        %vm211 = vcmp.ne.s32.totalorder %v209, 0
        %vm212 = vcmp.lt.s32.totalorder %v202, 0
        %vm213 = vcmp.lt.s32.totalorder %v209, 0
        %vm214 = vmand %vm212, %vm210
        %vm215 = vmand %vm213, %vm211
        %v216 = vadd.s32 %v202, 16
        %v217 = vadd.s32 %v209, 16
        %v218 = vsel %vm214, %v216, %v202
        %v219 = vsel %vm215, %v217, %v209
        %vm220 = vcmp.ge.s32.totalorder %v218, 1
        %vm221 = vcmp.ge.s32.totalorder %v219, 1
        %vm222 = vcmp.lt.s32.totalorder %v218, 15
        %vm223 = vcmp.lt.s32.totalorder %v219, 15
        %v224 = vsel %vm220, 1, 0
        %v225 = vsel %vm221, 1, 0
        %vm226 = vcmp.eq.s32.totalorder %v224, 1
        %vm227 = vcmp.eq.s32.totalorder %v225, 1
        %229 = vst [vmem:[#allocation1] ss:$2 sm:$0xff] %v189
        %v230 = vld.sshfl [vmem:[#allocation1] sm:$0xff pattern:$0x75316420]
        %v231 = vld.sshfl [vmem:[#allocation1 + $0x8] sm:$0xff pattern:$0x75316420]
        %v234 = vsel %vm226, %v230, 0.0
        %v235 = vsel %vm227, %v231, 0.0
        %237 = vset.pattern.permute.xlu0 0
        %238 = vperm.xlu0 %237, %v191
        %v239 = vpop.permute.xlu0 %238
        %v241 = vperm.slane %v234, 0
        %v242 = vperm.slane %v235, 0
        %v243 = vmul.f32 %v239, %v241
        %v244 = vmul.f32 %v239, %v242
        %v245 = vadd.f32 %v243, 0.0
        %v246 = vadd.f32 %v244, 0.0
        %247 = vset.pattern.permute.xlu0 1
        %248 = vperm.xlu0 %247, %v191
        %v249 = vpop.permute.xlu0 %248
        %v251 = vperm.slane %v234, 1
        %v252 = vperm.slane %v235, 1
        %v253 = vmul.f32 %v249, %v251
        %v254 = vmul.f32 %v249, %v252
        %v255 = vadd.f32 %v245, %v253
        %v256 = vadd.f32 %v246, %v254
        %257 = vset.pattern.permute.xlu0 2
        %258 = vperm.xlu0 %257, %v191
        %v259 = vpop.permute.xlu0 %258
        %v261 = vperm.slane %v234, 2
        %v262 = vperm.slane %v235, 2
        %v263 = vmul.f32 %v259, %v261
        %v264 = vmul.f32 %v259, %v262
        %v265 = vadd.f32 %v255, %v263
        %v266 = vadd.f32 %v256, %v264
        %267 = vset.pattern.permute.xlu0 3
        %268 = vperm.xlu0 %267, %v191
        %v269 = vpop.permute.xlu0 %268
        %v271 = vperm.slane %v234, 3
        %v272 = vperm.slane %v235, 3
        %v273 = vmul.f32 %v269, %v271
        %v274 = vmul.f32 %v269, %v272
        %v275 = vadd.f32 %v265, %v273
        %v276 = vadd.f32 %v266, %v274
        %277 = vset.pattern.permute.xlu0 4
        %278 = vperm.xlu0 %277, %v191
        %v279 = vpop.permute.xlu0 %278
        %v282 = vperm.slane %v189, 0
        %v283 = vperm.slane %v189, 4
        %v284 = vperm.slane %v190, 0
        %v288 = vperm.slane %v282, 0
        %v289 = vperm.slane %v283, 0
        %v290 = vperm.slane %v284, 0
        %v291 = vmul.f32 %v279, %v288
        %v292 = vmul.f32 %v279, %v289
        %v293 = vmul.f32 %v279, %v290
        %297 = vrot.lane.b32.xlu0 %v291, 127
        %v298 = vpop.permute.xlu0 %297
        %299 = vrot.lane.b32.xlu0 %v292, 127
        %v300 = vpop.permute.xlu0 %299
        %301 = vrot.lane.b32.xlu0 %v293, 127
        %v302 = vpop.permute.xlu0 %301
        %vm303 = vcmask 1039360
        %v304 = vsel %vm303, %v298, %v300
        %v305 = vsel %vm303, %v300, %v302
        %v308 = vadd.f32 %v275, %v304
        %v309 = vadd.f32 %v276, %v305
        %310 = vset.pattern.permute.xlu0 5
        %311 = vperm.xlu0 %310, %v191
        %v312 = vpop.permute.xlu0 %311
        %v314 = vperm.slane %v189, 1
        %v315 = vperm.slane %v189, 5
        %v316 = vperm.slane %v190, 1
        %v320 = vperm.slane %v314, 1
        %v321 = vperm.slane %v315, 1
        %v322 = vperm.slane %v316, 1
        %v323 = vmul.f32 %v312, %v320
        %v324 = vmul.f32 %v312, %v321
        %v325 = vmul.f32 %v312, %v322
        %329 = vrot.lane.b32.xlu0 %v323, 127
        %v330 = vpop.permute.xlu0 %329
        %331 = vrot.lane.b32.xlu0 %v324, 127
        %v332 = vpop.permute.xlu0 %331
        %333 = vrot.lane.b32.xlu0 %v325, 127
        %v334 = vpop.permute.xlu0 %333
        %v335 = vsel %vm303, %v330, %v332
        %v336 = vsel %vm303, %v332, %v334
        %v339 = vadd.f32 %v308, %v335
        %v340 = vadd.f32 %v309, %v336
        %341 = vset.pattern.permute.xlu0 6
        %342 = vperm.xlu0 %341, %v191
        %v343 = vpop.permute.xlu0 %342
        %v345 = vperm.slane %v189, 2
        %v346 = vperm.slane %v189, 6
        %v347 = vperm.slane %v190, 2
        %v351 = vperm.slane %v345, 2
        %v352 = vperm.slane %v346, 2
        %v353 = vperm.slane %v347, 2
        %v354 = vmul.f32 %v343, %v351
        %v355 = vmul.f32 %v343, %v352
        %v356 = vmul.f32 %v343, %v353
        %360 = vrot.lane.b32.xlu0 %v354, 127
        %v361 = vpop.permute.xlu0 %360
        %362 = vrot.lane.b32.xlu0 %v355, 127
        %v363 = vpop.permute.xlu0 %362
        %364 = vrot.lane.b32.xlu0 %v356, 127
        %v365 = vpop.permute.xlu0 %364
        %v366 = vsel %vm303, %v361, %v363
        %v367 = vsel %vm303, %v363, %v365
        %v370 = vadd.f32 %v339, %v366
        %v371 = vadd.f32 %v340, %v367
        %372 = vset.pattern.permute.xlu0 7
        %373 = vperm.xlu0 %372, %v191
        %v374 = vpop.permute.xlu0 %373
        %v376 = vperm.slane %v189, 3
        %v377 = vperm.slane %v189, 7
        %v378 = vperm.slane %v190, 3
        %v382 = vperm.slane %v376, 3
        %v383 = vperm.slane %v377, 3
        %v384 = vperm.slane %v378, 3
        %v385 = vmul.f32 %v374, %v382
        %v386 = vmul.f32 %v374, %v383
        %v387 = vmul.f32 %v374, %v384
        %391 = vrot.lane.b32.xlu0 %v385, 127
        %v392 = vpop.permute.xlu0 %391
        %393 = vrot.lane.b32.xlu0 %v386, 127
        %v394 = vpop.permute.xlu0 %393
        %395 = vrot.lane.b32.xlu0 %v387, 127
        %v396 = vpop.permute.xlu0 %395
        %v397 = vsel %vm303, %v392, %v394
        %v398 = vsel %vm303, %v394, %v396
        %v401 = vadd.f32 %v370, %v397
        %v402 = vadd.f32 %v371, %v398
        %v403 = vsel %vm222, 1, 0
        %v404 = vsel %vm223, 1, 0
        %vm405 = vcmp.eq.s32.totalorder %v403, 1
        %vm406 = vcmp.eq.s32.totalorder %v404, 1
        %407 = vst [vmem:[#allocation1] ss:$2 sm:$0xff] %v189
        %s408 = scalar_lea.vmem [#allocation1], 16
        %409 = vst [vmem:[%s408] ss:$2 sm:$0xff] %v190
        %v410 = vld.sshfl [vmem:[#allocation1] sm:$0xff pattern:$0x75316420]
        %v411 = vld.sshfl [vmem:[#allocation1 + $0x8] sm:$0xff pattern:$0x75316420]
        %v412 = vld.sshfl [vmem:[#allocation1 + $0x10] sm:$0xff pattern:$0x75316420]
        %413 = vrot.lane.b32.xlu0 %v410, 126
        %v414 = vpop.permute.xlu0 %413
        %415 = vrot.lane.b32.xlu0 %v411, 126
        %v416 = vpop.permute.xlu0 %415
        %417 = vrot.lane.b32.xlu0 %v412, 126
        %v418 = vpop.permute.xlu0 %417
        %vm419 = vcmask 1031168
        %v420 = vsel %vm419, %v414, %v416
        %v421 = vsel %vm419, %v416, %v418
        %v424 = vsel %vm405, %v420, 0.0
        %v425 = vsel %vm406, %v421, 0.0
        %426 = vset.pattern.permute.xlu0 8
        %427 = vperm.xlu0 %426, %v191
        %v428 = vpop.permute.xlu0 %427
        %v430 = vperm.slane %v424, 0
        %v431 = vperm.slane %v425, 0
        %v432 = vmul.f32 %v428, %v430
        %v433 = vmul.f32 %v428, %v431
        %v434 = vadd.f32 %v401, %v432
        %v435 = vadd.f32 %v402, %v433
        %436 = vset.pattern.permute.xlu0 9
        %437 = vperm.xlu0 %436, %v191
        %v438 = vpop.permute.xlu0 %437
        %v440 = vperm.slane %v424, 1
        %v441 = vperm.slane %v425, 1
        %v442 = vmul.f32 %v438, %v440
        %v443 = vmul.f32 %v438, %v441
        %v444 = vadd.f32 %v434, %v442
        %v445 = vadd.f32 %v435, %v443
        %446 = vset.pattern.permute.xlu0 10
        %447 = vperm.xlu0 %446, %v191
        %v448 = vpop.permute.xlu0 %447
        %v450 = vperm.slane %v424, 2
        %v451 = vperm.slane %v425, 2
        %v452 = vmul.f32 %v448, %v450
        %v453 = vmul.f32 %v448, %v451
        %v454 = vadd.f32 %v444, %v452
        %v455 = vadd.f32 %v445, %v453
        %456 = vset.pattern.permute.xlu0 11
        %457 = vperm.xlu0 %456, %v191
        %v458 = vpop.permute.xlu0 %457
        %v460 = vperm.slane %v424, 3
        %v461 = vperm.slane %v425, 3
        %v462 = vmul.f32 %v458, %v460
        %v463 = vmul.f32 %v458, %v461
        %v464 = vadd.f32 %v454, %v462
        %v465 = vadd.f32 %v455, %v463
        %466 = vst [vmem:[#allocation1] ss:$2 sm:$0xff] %v189
        %s467 = scalar_lea.vmem [#allocation1], 16
        %468 = vst [vmem:[%s467] ss:$2 sm:$0xff] %v190
        %v469 = vld.sshfl [vmem:[#allocation1] sm:$0xff pattern:$0x75316420]
        %v470 = vld.sshfl [vmem:[#allocation1 + $0x8] sm:$0xff pattern:$0x75316420]
        %v471 = vld.sshfl [vmem:[#allocation1 + $0x10] sm:$0xff pattern:$0x75316420]
        %472 = vrot.lane.b32.xlu0 %v469, 112
        %v473 = vpop.permute.xlu0 %472
        %474 = vrot.lane.b32.xlu0 %v470, 112
        %v475 = vpop.permute.xlu0 %474
        %476 = vrot.lane.b32.xlu0 %v471, 112
        %v477 = vpop.permute.xlu0 %476
        %vm478 = vcmask 916480
        %v479 = vsel %vm478, %v473, %v475
        %v480 = vsel %vm478, %v475, %v477
        %v483 = vsel %vm226, %v479, 0.0
        %v484 = vsel %vm227, %v480, 0.0
        %485 = vset.pattern.permute.xlu0 12
        %486 = vperm.xlu0 %485, %v191
        %v487 = vpop.permute.xlu0 %486
        %v489 = vperm.slane %v483, 0
        %v490 = vperm.slane %v484, 0
        %v491 = vmul.f32 %v487, %v489
        %v492 = vmul.f32 %v487, %v490
        %v493 = vadd.f32 %v464, %v491
        %v494 = vadd.f32 %v465, %v492
        %495 = vset.pattern.permute.xlu0 13
        %496 = vperm.xlu0 %495, %v191
        %v497 = vpop.permute.xlu0 %496
        %v499 = vperm.slane %v483, 1
        %v500 = vperm.slane %v484, 1
        %v501 = vmul.f32 %v497, %v499
        %v502 = vmul.f32 %v497, %v500
        %v503 = vadd.f32 %v493, %v501
        %v504 = vadd.f32 %v494, %v502
        %505 = vset.pattern.permute.xlu0 14
        %506 = vperm.xlu0 %505, %v191
        %v507 = vpop.permute.xlu0 %506
        %v509 = vperm.slane %v483, 2
        %v510 = vperm.slane %v484, 2
        %v511 = vmul.f32 %v507, %v509
        %v512 = vmul.f32 %v507, %v510
        %v513 = vadd.f32 %v503, %v511
        %v514 = vadd.f32 %v504, %v512
        %515 = vset.pattern.permute.xlu0 15
        %516 = vperm.xlu0 %515, %v191
        %v517 = vpop.permute.xlu0 %516
        %v519 = vperm.slane %v483, 3
        %v520 = vperm.slane %v484, 3
        %v521 = vmul.f32 %v517, %v519
        %v522 = vmul.f32 %v517, %v520
        %v523 = vadd.f32 %v513, %v521
        %v524 = vadd.f32 %v514, %v522
        %525 = vset.pattern.permute.xlu0 16
        %526 = vperm.xlu0 %525, %v191
        %v527 = vpop.permute.xlu0 %526
        %v529 = vmul.f32 %v527, %v288
        %v530 = vmul.f32 %v527, %v289
        %v531 = vmul.f32 %v527, %v290
        %535 = vrot.lane.b32.xlu0 %v529, 111
        %v536 = vpop.permute.xlu0 %535
        %537 = vrot.lane.b32.xlu0 %v530, 111
        %v538 = vpop.permute.xlu0 %537
        %539 = vrot.lane.b32.xlu0 %v531, 111
        %v540 = vpop.permute.xlu0 %539
        %vm541 = vcmask 908288
        %v542 = vsel %vm541, %v536, %v538
        %v543 = vsel %vm541, %v538, %v540
        %v546 = vadd.f32 %v523, %v542
        %v547 = vadd.f32 %v524, %v543
        %548 = vset.pattern.permute.xlu0 17
        %549 = vperm.xlu0 %548, %v191
        %v550 = vpop.permute.xlu0 %549
        %v552 = vmul.f32 %v550, %v320
        %v553 = vmul.f32 %v550, %v321
        %v554 = vmul.f32 %v550, %v322
        %558 = vrot.lane.b32.xlu0 %v552, 111
        %v559 = vpop.permute.xlu0 %558
        %560 = vrot.lane.b32.xlu0 %v553, 111
        %v561 = vpop.permute.xlu0 %560
        %562 = vrot.lane.b32.xlu0 %v554, 111
        %v563 = vpop.permute.xlu0 %562
        %v564 = vsel %vm541, %v559, %v561
        %v565 = vsel %vm541, %v561, %v563
        %v568 = vadd.f32 %v546, %v564
        %v569 = vadd.f32 %v547, %v565
        %570 = vset.pattern.permute.xlu0 18
        %571 = vperm.xlu0 %570, %v191
        %v572 = vpop.permute.xlu0 %571
        %v574 = vmul.f32 %v572, %v351
        %v575 = vmul.f32 %v572, %v352
        %v576 = vmul.f32 %v572, %v353
        %580 = vrot.lane.b32.xlu0 %v574, 111
        %v581 = vpop.permute.xlu0 %580
        %582 = vrot.lane.b32.xlu0 %v575, 111
        %v583 = vpop.permute.xlu0 %582
        %584 = vrot.lane.b32.xlu0 %v576, 111
        %v585 = vpop.permute.xlu0 %584
        %v586 = vsel %vm541, %v581, %v583
        %v587 = vsel %vm541, %v583, %v585
        %v590 = vadd.f32 %v568, %v586
        %v591 = vadd.f32 %v569, %v587
        %592 = vset.pattern.permute.xlu0 19
        %593 = vperm.xlu0 %592, %v191
        %v594 = vpop.permute.xlu0 %593
        %v596 = vmul.f32 %v594, %v382
        %v597 = vmul.f32 %v594, %v383
        %v598 = vmul.f32 %v594, %v384
        %602 = vrot.lane.b32.xlu0 %v596, 111
        %v603 = vpop.permute.xlu0 %602
        %604 = vrot.lane.b32.xlu0 %v597, 111
        %v605 = vpop.permute.xlu0 %604
        %606 = vrot.lane.b32.xlu0 %v598, 111
        %v607 = vpop.permute.xlu0 %606
        %v608 = vsel %vm541, %v603, %v605
        %v609 = vsel %vm541, %v605, %v607
        %v612 = vadd.f32 %v590, %v608
        %v613 = vadd.f32 %v591, %v609
        %614 = vst [vmem:[#allocation1] ss:$2 sm:$0xff] %v189
        %s615 = scalar_lea.vmem [#allocation1], 16
        %616 = vst [vmem:[%s615] ss:$2 sm:$0xff] %v190
        %v617 = vld.sshfl [vmem:[#allocation1] sm:$0xff pattern:$0x75316420]
        %v618 = vld.sshfl [vmem:[#allocation1 + $0x8] sm:$0xff pattern:$0x75316420]
        %v619 = vld.sshfl [vmem:[#allocation1 + $0x10] sm:$0xff pattern:$0x75316420]
        %620 = vrot.lane.b32.xlu0 %v617, 110
        %v621 = vpop.permute.xlu0 %620
        %622 = vrot.lane.b32.xlu0 %v618, 110
        %v623 = vpop.permute.xlu0 %622
        %624 = vrot.lane.b32.xlu0 %v619, 110
        %v625 = vpop.permute.xlu0 %624
        %vm626 = vcmask 900096
        %v627 = vsel %vm626, %v621, %v623
        %v628 = vsel %vm626, %v623, %v625
        %v631 = vsel %vm405, %v627, 0.0
        %v632 = vsel %vm406, %v628, 0.0
        %633 = vset.pattern.permute.xlu0 20
        %634 = vperm.xlu0 %633, %v191
        %v635 = vpop.permute.xlu0 %634
        %v637 = vperm.slane %v631, 0
        %v638 = vperm.slane %v632, 0
        %v639 = vmul.f32 %v635, %v637
        %v640 = vmul.f32 %v635, %v638
        %v641 = vadd.f32 %v612, %v639
        %v642 = vadd.f32 %v613, %v640
        %643 = vset.pattern.permute.xlu0 21
        %644 = vperm.xlu0 %643, %v191
        %v645 = vpop.permute.xlu0 %644
        %v647 = vperm.slane %v631, 1
        %v648 = vperm.slane %v632, 1
        %v649 = vmul.f32 %v645, %v647
        %v650 = vmul.f32 %v645, %v648
        %v651 = vadd.f32 %v641, %v649
        %v652 = vadd.f32 %v642, %v650
        %653 = vset.pattern.permute.xlu0 22
        %654 = vperm.xlu0 %653, %v191
        %v655 = vpop.permute.xlu0 %654
        %v657 = vperm.slane %v631, 2
        %v658 = vperm.slane %v632, 2
        %v659 = vmul.f32 %v655, %v657
        %v660 = vmul.f32 %v655, %v658
        %v661 = vadd.f32 %v651, %v659
        %v662 = vadd.f32 %v652, %v660
        %663 = vset.pattern.permute.xlu0 23
        %664 = vperm.xlu0 %663, %v191
        %v665 = vpop.permute.xlu0 %664
        %v667 = vperm.slane %v631, 3
        %v668 = vperm.slane %v632, 3
        %v669 = vmul.f32 %v665, %v667
        %v670 = vmul.f32 %v665, %v668
        %v671 = vadd.f32 %v661, %v669
        %v672 = vadd.f32 %v662, %v670
        %673 = vst [vmem:[#allocation1] ss:$2 sm:$0xff] %v189
        %s674 = scalar_lea.vmem [#allocation1], 16
        %675 = vst [vmem:[%s674] ss:$2 sm:$0xff] %v190
        %v676 = vld.sshfl [vmem:[#allocation1] sm:$0xff pattern:$0x75316420]
        %v677 = vld.sshfl [vmem:[#allocation1 + $0x8] sm:$0xff pattern:$0x75316420]
        %v678 = vld.sshfl [vmem:[#allocation1 + $0x10] sm:$0xff pattern:$0x75316420]
        %679 = vrot.lane.b32.xlu0 %v676, 96
        %v680 = vpop.permute.xlu0 %679
        %681 = vrot.lane.b32.xlu0 %v677, 96
        %v682 = vpop.permute.xlu0 %681
        %683 = vrot.lane.b32.xlu0 %v678, 96
        %v684 = vpop.permute.xlu0 %683
        %vm685 = vcmask 785408
        %v686 = vsel %vm685, %v680, %v682
        %v687 = vsel %vm685, %v682, %v684
        %v690 = vsel %vm226, %v686, 0.0
        %v691 = vsel %vm227, %v687, 0.0
        %692 = vset.pattern.permute.xlu0 24
        %693 = vperm.xlu0 %692, %v191
        %v694 = vpop.permute.xlu0 %693
        %v696 = vperm.slane %v690, 0
        %v697 = vperm.slane %v691, 0
        %v698 = vmul.f32 %v694, %v696
        %v699 = vmul.f32 %v694, %v697
        %v700 = vadd.f32 %v671, %v698
        %v701 = vadd.f32 %v672, %v699
        %702 = vset.pattern.permute.xlu0 25
        %703 = vperm.xlu0 %702, %v191
        %v704 = vpop.permute.xlu0 %703
        %v706 = vperm.slane %v690, 1
        %v707 = vperm.slane %v691, 1
        %v708 = vmul.f32 %v704, %v706
        %v709 = vmul.f32 %v704, %v707
        %v710 = vadd.f32 %v700, %v708
        %v711 = vadd.f32 %v701, %v709
        %712 = vset.pattern.permute.xlu0 26
        %713 = vperm.xlu0 %712, %v191
        %v714 = vpop.permute.xlu0 %713
        %v716 = vperm.slane %v690, 2
        %v717 = vperm.slane %v691, 2
        %v718 = vmul.f32 %v714, %v716
        %v719 = vmul.f32 %v714, %v717
        %v720 = vadd.f32 %v710, %v718
        %v721 = vadd.f32 %v711, %v719
        %722 = vset.pattern.permute.xlu0 27
        %723 = vperm.xlu0 %722, %v191
        %v724 = vpop.permute.xlu0 %723
        %v726 = vperm.slane %v690, 3
        %v727 = vperm.slane %v691, 3
        %v728 = vmul.f32 %v724, %v726
        %v729 = vmul.f32 %v724, %v727
        %v730 = vadd.f32 %v720, %v728
        %v731 = vadd.f32 %v721, %v729
        %732 = vset.pattern.permute.xlu0 28
        %733 = vperm.xlu0 %732, %v191
        %v734 = vpop.permute.xlu0 %733
        %v736 = vmul.f32 %v734, %v288
        %v737 = vmul.f32 %v734, %v289
        %v738 = vmul.f32 %v734, %v290
        %742 = vrot.lane.b32.xlu0 %v736, 95
        %v743 = vpop.permute.xlu0 %742
        %744 = vrot.lane.b32.xlu0 %v737, 95
        %v745 = vpop.permute.xlu0 %744
        %746 = vrot.lane.b32.xlu0 %v738, 95
        %v747 = vpop.permute.xlu0 %746
        %vm748 = vcmask 777216
        %v749 = vsel %vm748, %v743, %v745
        %v750 = vsel %vm748, %v745, %v747
        %v753 = vadd.f32 %v730, %v749
        %v754 = vadd.f32 %v731, %v750
        %755 = vset.pattern.permute.xlu0 29
        %756 = vperm.xlu0 %755, %v191
        %v757 = vpop.permute.xlu0 %756
        %v759 = vmul.f32 %v757, %v320
        %v760 = vmul.f32 %v757, %v321
        %v761 = vmul.f32 %v757, %v322
        %765 = vrot.lane.b32.xlu0 %v759, 95
        %v766 = vpop.permute.xlu0 %765
        %767 = vrot.lane.b32.xlu0 %v760, 95
        %v768 = vpop.permute.xlu0 %767
        %769 = vrot.lane.b32.xlu0 %v761, 95
        %v770 = vpop.permute.xlu0 %769
        %v771 = vsel %vm748, %v766, %v768
        %v772 = vsel %vm748, %v768, %v770
        %v775 = vadd.f32 %v753, %v771
        %v776 = vadd.f32 %v754, %v772
        %777 = vset.pattern.permute.xlu0 30
        %778 = vperm.xlu0 %777, %v191
        %v779 = vpop.permute.xlu0 %778
        %v781 = vmul.f32 %v779, %v351
        %v782 = vmul.f32 %v779, %v352
        %v783 = vmul.f32 %v779, %v353
        %787 = vrot.lane.b32.xlu0 %v781, 95
        %v788 = vpop.permute.xlu0 %787
        %789 = vrot.lane.b32.xlu0 %v782, 95
        %v790 = vpop.permute.xlu0 %789
        %791 = vrot.lane.b32.xlu0 %v783, 95
        %v792 = vpop.permute.xlu0 %791
        %v793 = vsel %vm748, %v788, %v790
        %v794 = vsel %vm748, %v790, %v792
        %v797 = vadd.f32 %v775, %v793
        %v798 = vadd.f32 %v776, %v794
        %799 = vset.pattern.permute.xlu0 31
        %800 = vperm.xlu0 %799, %v191
        %v801 = vpop.permute.xlu0 %800
        %v803 = vmul.f32 %v801, %v382
        %v804 = vmul.f32 %v801, %v383
        %v805 = vmul.f32 %v801, %v384
        %809 = vrot.lane.b32.xlu0 %v803, 95
        %v810 = vpop.permute.xlu0 %809
        %811 = vrot.lane.b32.xlu0 %v804, 95
        %v812 = vpop.permute.xlu0 %811
        %813 = vrot.lane.b32.xlu0 %v805, 95
        %v814 = vpop.permute.xlu0 %813
        %v815 = vsel %vm748, %v810, %v812
        %v816 = vsel %vm748, %v812, %v814
        %v819 = vadd.f32 %v797, %v815
        %v820 = vadd.f32 %v798, %v816
        %821 = vst [vmem:[#allocation1] ss:$2 sm:$0xff] %v189
        %s822 = scalar_lea.vmem [#allocation1], 16
        %823 = vst [vmem:[%s822] ss:$2 sm:$0xff] %v190
        %v824 = vld.sshfl [vmem:[#allocation1] sm:$0xff pattern:$0x75316420]
        %v825 = vld.sshfl [vmem:[#allocation1 + $0x8] sm:$0xff pattern:$0x75316420]
        %v826 = vld.sshfl [vmem:[#allocation1 + $0x10] sm:$0xff pattern:$0x75316420]
        %827 = vrot.lane.b32.xlu0 %v824, 94
        %v828 = vpop.permute.xlu0 %827
        %829 = vrot.lane.b32.xlu0 %v825, 94
        %v830 = vpop.permute.xlu0 %829
        %831 = vrot.lane.b32.xlu0 %v826, 94
        %v832 = vpop.permute.xlu0 %831
        %vm833 = vcmask 769024
        %v834 = vsel %vm833, %v828, %v830
        %v835 = vsel %vm833, %v830, %v832
        %v838 = vsel %vm405, %v834, 0.0
        %v839 = vsel %vm406, %v835, 0.0
        %840 = vset.pattern.permute.xlu0 32
        %841 = vperm.xlu0 %840, %v191
        %v842 = vpop.permute.xlu0 %841
        %v844 = vperm.slane %v838, 0
        %v845 = vperm.slane %v839, 0
        %v846 = vmul.f32 %v842, %v844
        %v847 = vmul.f32 %v842, %v845
        %v848 = vadd.f32 %v819, %v846
        %v849 = vadd.f32 %v820, %v847
        %850 = vset.pattern.permute.xlu0 33
        %851 = vperm.xlu0 %850, %v191
        %v852 = vpop.permute.xlu0 %851
        %v854 = vperm.slane %v838, 1
        %v855 = vperm.slane %v839, 1
        %v856 = vmul.f32 %v852, %v854
        %v857 = vmul.f32 %v852, %v855
        %v858 = vadd.f32 %v848, %v856
        %v859 = vadd.f32 %v849, %v857
        %860 = vset.pattern.permute.xlu0 34
        %861 = vperm.xlu0 %860, %v191
        %v862 = vpop.permute.xlu0 %861
        %v864 = vperm.slane %v838, 2
        %v865 = vperm.slane %v839, 2
        %v866 = vmul.f32 %v862, %v864
        %v867 = vmul.f32 %v862, %v865
        %v868 = vadd.f32 %v858, %v866
        %v869 = vadd.f32 %v859, %v867
        %870 = vset.pattern.permute.xlu0 35
        %871 = vperm.xlu0 %870, %v191
        %v872 = vpop.permute.xlu0 %871
        %v874 = vperm.slane %v838, 3
        %v875 = vperm.slane %v839, 3
        %v876 = vmul.f32 %v872, %v874
        %v877 = vmul.f32 %v872, %v875
        %v878 = vadd.f32 %v868, %v876
        %v879 = vadd.f32 %v869, %v877
        %881 = vset.pattern.permute.xlu0 0
        %882 = vperm.xlu0 %881, %v192
        %v883 = vpop.permute.xlu0 %882
        %v885 = vadd.f32 %v878, %v883
        %v886 = vadd.f32 %v879, %v883
        %887 = vset.pattern.permute.xlu0 1
        %888 = vperm.xlu0 %887, %v192
        %v889 = vpop.permute.xlu0 %888
        %v891 = vmul.f32 %v885, %v889
        %v892 = vmul.f32 %v886, %v889
        %893 = vset.pattern.permute.xlu0 2
        %894 = vperm.xlu0 %893, %v192
        %v895 = vpop.permute.xlu0 %894
        %v897 = vadd.f32 %v891, %v895
        %v898 = vadd.f32 %v892, %v895
        %v899 = vmax.f32 %v897, 0.0
        %v900 = vmax.f32 %v898, 0.0
        %901 = vst [vmem:[%s188] sm:$0xff] %v899
        %902 = vst [vmem:[%s188 + $0x8] sm:$0xff] %v900
        %s903 = sand.u32 %s96, 1
        %s904 = scalar_lea.sflag [#allocation4], %s903
        %s905 = sand.u32 %s96, 1
        %s906 = smul.addr %s905, 16
        %s907 = scalar_lea.vmem [#allocation5], %s906
        // Predicated region
        $region37: #{tpu_custom_call.1} parent=31 // pred_check
          %p908 = pneg %p106
        $region38: #{tpu_custom_call.1} parent=31 // pred_check_branch
          %910 = sbr.rel (%p908) target = $region40
        $region39: #{tpu_custom_call.1} parent=31 // pred_region
          %912 = vsyncadd %s904, 0
          %s913 = smul.addr %s20, 2
          %s914 = smul.addr %s913, 8
          %s915 = scalar_lea.hbm %s3, %s914
          %s917 = sshll.u32 %s907, 4
          %s918 = int_to_ptr.vmem [resolvable:$true] %s917
          %s919 = sshll.u32 %s915, 4
          %s920 = int_to_ptr.hbm [resolvable:$true] %s919
          %922 = dma.vmem_to_hbm [thread:$0]  %s918, 256, %s920, %s904
        $region40: #{tpu_custom_call.1} parent=31 // pred_fallthru
          _
      $region32: #{tpu_custom_call.1} parent=5 // pred_fallthru
        _
      %p923 = scmp.le.s32.totalorder 2, %s15
      // Predicated region
      $region41: #{tpu_custom_call.1} parent=5 // pred_check
        %p924 = pneg %p923
      $region42: #{tpu_custom_call.1} parent=5 // pred_check_branch
        %926 = sbr.rel (%p924) target = $region44
      $region43: #{tpu_custom_call.1} parent=5 // pred_region
        %s927 = ssub.s32 %s15, 2
        // Predicated region
        $region45: #{tpu_custom_call.1} parent=43 // pred_check
          %p928 = pneg %p112
        $region46: #{tpu_custom_call.1} parent=43 // pred_check_branch
          %930 = sbr.rel (%p928) target = $region48
        $region47: #{tpu_custom_call.1} parent=43 // pred_region
          %s931 = sand.u32 %s97, 1
          %s932 = scalar_lea.sflag [#allocation4], %s931
          %s933 = sand.u32 %s97, 1
          %s934 = smul.addr %s933, 16
          %s935 = scalar_lea.vmem [#allocation5], %s934
          %937 = dma.done %s932, 256
        $region48: #{tpu_custom_call.1} parent=43 // pred_fallthru
          _
      $region44: #{tpu_custom_call.1} parent=5 // pred_fallthru
        _
    $region6: #{tpu_custom_call.1} parent=1 // loop_footer
      %s19 = sadd.s32 1, %s15
    $region7: #{tpu_custom_call.1} parent=1 // loop_footer_branch
      %14 = sbr.rel target = $region3
    $region8: #{tpu_custom_call.1} parent=1 // loop_exit
      _
    %938 = vsyncpa [#allocation3], 1
    %s939 = scalar_lea.sflag [#allocation3], 1
    %940 = vsyncpa %s939, 1
    %941 = vsyncpa [#allocation4], 1
    %s942 = scalar_lea.sflag [#allocation4], 1
    %943 = vsyncpa %s942, 1

</llo_original>
